<compile_context>
chip_gen: v6e
topology: v6e:2x2x1
jax: 0.10.0
libtpu: 0.0.40
codegen_flags: <defaults>
</compile_context>

<pallas_src>
import math
import functools

import jax
import jax.numpy as jnp
from jax.experimental import pallas as pl
from jax.experimental.pallas import tpu as pltpu


# --------------------------------------------------------------------------- #
# Kernel
# --------------------------------------------------------------------------- #
def _adaptive_sim_kernel(x_ref, h_ref, w1t_ref, b1_ref, w2t_ref, b2_ref,
                         norm_ref, adj_ref, sim_ref, featg_ref,
                         *, alpha, quarter_scale, row_tile):
    TB, N, D = x_ref.shape
    H = w1t_ref.shape[1]
    r = pl.program_id(1)                       # row-tile index (inner grid axis)

    # Gated node features are computed ONCE per batch tile (row step 0) and kept
    # resident in VMEM scratch for every row tile of the similarity.
    @pl.when(r == 0)
    def _():
        nf = x_ref[...].astype(jnp.float32) + h_ref[...].astype(jnp.float32)  # (TB,N,D)

        # start_fc (Conv1d D->H, k=1): one flattened matmul for all TB*N rows.
        # (N is a multiple of 8 in practice, so this reshape is layout-free.)
        feat = jnp.dot(nf.reshape(TB * N, D), w1t_ref[...],
                       preferred_element_type=jnp.float32) + b1_ref[...]       # (TB*N,H)
        feat = feat.reshape(TB, N, H)

        # AdaptiveAvgPool1d(1) / AdaptiveMaxPool1d(1) over the hidden axis,
        # produced directly as (TB, N) -- no pool.T transpose needed.
        pool = 0.5 * (jnp.mean(feat, axis=-1) + jnp.max(feat, axis=-1))        # (TB,N)

        # fc2 (Conv1d N->H, k=1) + ReLU as one (TB, N) @ (N, H) matmul.
        # The 1/sqrt(D) similarity scale is folded in as D**-1/4 per factor.
        gate = jnp.dot(pool, w2t_ref[...],
                       preferred_element_type=jnp.float32) + b2_ref[...]       # (TB,H)
        gate = jnp.maximum(gate, 0.0) * quarter_scale

        # Stored in f32 or bf16 (bf16 feeds the MXU directly for large N).
        featg_ref[...] = (feat * gate[:, None, :]).astype(featg_ref.dtype)

    rhs = featg_ref[...]                                           # (TB, N,  H)
    if row_tile == N:                                              # single row tile
        lhs = rhs
    else:
        start = pl.multiple_of(r * row_tile, row_tile)
        lhs = featg_ref[:, pl.ds(start, row_tile), :]              # (TB, tn, H)

    # similarity = featg @ featg^T (hidden dims contracted, f32 accumulation).
    # NOTE: NT-form batched dot (same pattern as flash attention's q.k^T); if a
    # bundle dump ever shows a per-step vxpose of the (N,H) RHS, pre-transpose
    # the scratch into (TB, H, N) once at r == 0 instead.
    sim = jnp.einsum('bqh,bkh->bqk', lhs, rhs,
                     preferred_element_type=jnp.float32)           # (TB, tn, N)

    adj = jnp.maximum(jnp.tanh(alpha * sim), 0.0)
    # NOTE: matches PyTorch -- an all-zero adj row still yields 0/0 = NaN.
    inv_rowsum = pl.reciprocal(jnp.sum(adj, axis=-1, keepdims=True), approx=False)

    sim_ref[...] = sim
    adj_ref[...] = adj
    norm_ref[...] = adj * inv_rowsum


# --------------------------------------------------------------------------- #
# Tiling heuristics
# --------------------------------------------------------------------------- #
def _vmem_bytes(tb, tn, N, D, H, featg_elem_bytes):
    """Per-step VMEM footprint: double-buffered pipeline blocks + persistent
    featg scratch + live in-kernel intermediates (feat/featg/sim/adj)."""
    io = 4 * (2 * 2 * tb * N * D                  # x, hidden (double-buffered)
              + 2 * 3 * tb * tn * N               # 3 outputs (double-buffered)
              + 2 * (D * H + N * H + 2 * H))      # weights / biases
    scratch = featg_elem_bytes * tb * N * H       # persistent featg scratch
    inter = 4 * (2 * tb * N * H + tb * N * D      # nf / feat / featg at r == 0
                 + 3 * tb * tn * N)               # sim / adj / norm live values
    return io + scratch + inter


def _row_tile_candidates(N):
    cands = [N]                                   # prefer an un-tiled row axis
    if N % 8 == 0:
        for t in (512, 256, 128, 64, 32, 16, 8):
            if t < N and N % t == 0:
                cands.append(t)
    return cands


def _choose_tiles(B, N, D, H, budget_bytes, multi_tc, featg_elem_bytes):
    """Largest batch tile (capped to keep >=2 parallel grid steps only on
    multi-TensorCore chips), then the largest row tile that fits the budget."""
    tb_cap = B
    if multi_tc and B >= 2:
        tb_cap = max(1, pl.cdiv(B, 2))            # feed both TensorCores
    for tb in range(tb_cap, 0, -1):
        for tn in _row_tile_candidates(N):
            if _vmem_bytes(tb, tn, N, D, H, featg_elem_bytes) <= budget_bytes:
                return tb, tn
    return 1, _row_tile_candidates(N)[-1]


def _hw_info():
    """(physical VMEM bytes, has >1 TensorCore per device), with safe fallbacks."""
    vmem = 64 * 1024 * 1024                       # conservative (v7x per-TC)
    multi_tc = True                               # mild default: cap TB at ~B/2
    try:
        info = pltpu.get_tpu_info()
        vmem = int(getattr(info, "vmem_capacity_bytes", vmem))
    except Exception:
        pass
    try:
        kind = jax.devices()[0].device_kind.lower()
        if any(tag in kind for tag in ("v5e", "v6e", "lite")):
            multi_tc = False                      # single TensorCore per chip
    except Exception:
        pass
    return vmem, multi_tc


# --------------------------------------------------------------------------- #
# Wrapper
# --------------------------------------------------------------------------- #
def adaptive_similarity_pool(x, hidden, w1, b1, w2, b2, alpha=1.0,
                             *, row_tile=None, bf16_sim=None):
    """x, hidden: (B, N, D).  w1: (H, D), b1: (H,), w2: (H, N), b2: (H,).

    Returns (norm_adj, adj, similarity), each (B, N, N) float32, matching
    AdaptiveSimilarityGenerator_pool.forward.
    """
    B, N, D = x.shape
    H = w1.shape[0]

    # bf16 MXU operands for the (N x N) similarity only where the matmul is
    # large enough to matter (override via bf16_sim=True/False).
    if bf16_sim is None:
        bf16_sim = N >= 256
    featg_dtype = jnp.bfloat16 if bf16_sim else jnp.float32
    featg_bytes = 2 if bf16_sim else 4

    phys_vmem, multi_tc = _hw_info()
    TB, tn = _choose_tiles(B, N, D, H, int(0.6 * phys_vmem), multi_tc, featg_bytes)
    if row_tile is not None:
        tn = int(row_tile)
    assert N % tn == 0 and (tn == N or tn % 8 == 0), (N, tn)

    # B need not divide TB: boundary batch blocks are masked by Pallas.
    grid = (pl.cdiv(B, TB), N // tn)

    kernel = functools.partial(_adaptive_sim_kernel,
                               alpha=float(alpha),
                               quarter_scale=float(D) ** -0.25,
                               row_tile=tn)

    # Outputs are stored un-padded as (B, N, N): no wrapper-side slice pass and
    # no padded-write inflation.
    out_shape = tuple(jax.ShapeDtypeStruct((B, N, N), jnp.float32) for _ in range(3))

    grid_spec = pltpu.PrefetchScalarGridSpec(
        num_scalar_prefetch=0,
        grid=grid,
        in_specs=[
            pl.BlockSpec((TB, N, D), lambda b, r: (b, 0, 0)),   # x
            pl.BlockSpec((TB, N, D), lambda b, r: (b, 0, 0)),   # hidden
            pl.BlockSpec((D, H), lambda b, r: (0, 0)),          # W1^T
            pl.BlockSpec((1, H), lambda b, r: (0, 0)),          # b1
            pl.BlockSpec((N, H), lambda b, r: (0, 0)),          # W2^T
            pl.BlockSpec((1, H), lambda b, r: (0, 0)),          # b2
        ],
        out_specs=[
            pl.BlockSpec((TB, tn, N), lambda b, r: (b, r, 0)),  # norm_adj
            pl.BlockSpec((TB, tn, N), lambda b, r: (b, r, 0)),  # adj
            pl.BlockSpec((TB, tn, N), lambda b, r: (b, r, 0)),  # similarity
        ],
        scratch_shapes=[pltpu.VMEM((TB, N, H), featg_dtype)],    # persistent featg
    )

    need = _vmem_bytes(TB, tn, N, D, H, featg_bytes)
    vmem_limit = int(min(0.8 * phys_vmem, max(32 * 1024 * 1024, 1.5 * need)))

    return pl.pallas_call(
        kernel,
        out_shape=out_shape,
        grid_spec=grid_spec,
        compiler_params=pltpu.CompilerParams(
            dimension_semantics=("parallel", "arbitrary"),
            vmem_limit_bytes=vmem_limit),
    )(x, hidden, w1.T, b1.reshape(1, H), w2.T, b2.reshape(1, H))


# --------------------------------------------------------------------------- #
# Pure-JAX reference (mirror of the PyTorch forward)
# --------------------------------------------------------------------------- #
def _reference(x, hidden, w1, b1, w2, b2, alpha=1.0, sim_in_bf16=False):
    D = x.shape[-1]
    nf = x + hidden
    feat = jnp.einsum('bnd,hd->bnh', nf, w1) + b1                    # start_fc
    pool = (jnp.mean(feat, -1) + jnp.max(feat, -1)) * 0.5            # avg+max pool
    gate = jax.nn.relu(jnp.einsum('bn,hn->bh', pool, w2) + b2)       # fc2
    if sim_in_bf16:
        # Mirror the kernel's bf16 MXU operands (scale folded before the cast).
        g = (feat * (gate * D ** -0.25)[:, None, :]).astype(jnp.bfloat16)
        sim = jnp.einsum('bnh,bmh->bnm', g, g, preferred_element_type=jnp.float32)
    else:
        f2 = feat * gate[:, None, :]
        sim = jnp.einsum('bnh,bmh->bnm', f2, f2) / math.sqrt(D)
    adj = jax.nn.relu(jnp.tanh(alpha * sim))
    norm = adj / jnp.sum(adj, -1, keepdims=True)
    return norm, adj, sim


if __name__ == "__main__":
    # ---- case 1: module-faithful small shapes, f32 end to end -------------
    B, N, D, H, alpha = 4, 8, 4, 32, 1.0
    key = jax.random.PRNGKey(0)
    kx, kh, kw1, kb1, kw2, kb2 = jax.random.split(key, 6)

    x = jax.random.normal(kx, (B, N, D), dtype=jnp.float32)
    hidden = jax.random.normal(kh, (B, N, D), dtype=jnp.float32)
    w1 = 0.2 * jax.random.normal(kw1, (H, D), dtype=jnp.float32)        # start_fc.weight
    b1 = 0.05 * jax.random.normal(kb1, (H,), dtype=jnp.float32)         # start_fc.bias
    w2 = 0.2 * jax.random.normal(kw2, (H, N), dtype=jnp.float32)        # fc2[0].weight
    b2 = 0.05 + 0.05 * jax.random.normal(kb2, (H,), dtype=jnp.float32)  # fc2[0].bias

    norm_adj, adj, sim = adaptive_similarity_pool(x, hidden, w1, b1, w2, b2, alpha)
    jax.block_until_ready((norm_adj, adj, sim))

    r_norm, r_adj, r_sim = _reference(x, hidden, w1, b1, w2, b2, alpha)
    assert jnp.allclose(sim, r_sim, atol=1e-4, rtol=1e-4)
    assert jnp.allclose(adj, r_adj, atol=1e-4, rtol=1e-4)
    assert jnp.allclose(norm_adj, r_norm, atol=1e-4, rtol=1e-4)

    # ---- case 2: larger node count exercising row tiling + bf16 MXU -------
    B2, N2, D2, H2 = 2, 256, 16, 32
    k = jax.random.split(jax.random.PRNGKey(1), 6)
    x2 = jax.random.normal(k[0], (B2, N2, D2), dtype=jnp.float32)
    h2 = jax.random.normal(k[1], (B2, N2, D2), dtype=jnp.float32)
    w1b = 0.2 * jax.random.normal(k[2], (H2, D2), dtype=jnp.float32)
    b1b = 0.05 * jax.random.normal(k[3], (H2,), dtype=jnp.float32)
    w2b = 0.05 * jax.random.normal(k[4], (H2, N2), dtype=jnp.float32)
    b2b = 0.05 + 0.05 * jax.random.normal(k[5], (H2,), dtype=jnp.float32)

    n2, a2, s2 = adaptive_similarity_pool(x2, h2, w1b, b1b, w2b, b2b, alpha,
                                          row_tile=128, bf16_sim=True)
    jax.block_until_ready((n2, a2, s2))

    rn2, ra2, rs2 = _reference(x2, h2, w1b, b1b, w2b, b2b, alpha, sim_in_bf16=True)
    assert jnp.allclose(s2, rs2, atol=2e-2, rtol=2e-2)
    assert jnp.allclose(a2, ra2, atol=2e-2, rtol=2e-2)
    assert jnp.allclose(n2, rn2, atol=2e-2, rtol=2e-2)

    # TODO(synk): fc3 (Conv1d H->N + Sigmoid) and dropout are defined in
    # __init__ but never used in forward, so they are intentionally omitted.
    print("KERNEL_OK")
</pallas_src>

<mosaic_0001>
module attributes {stable_mosaic.version = 11 : i64} {
  func.func @_adaptive_sim_kernel(%arg0: i32, %arg1: i32, %arg2: memref<2x8x4xf32, #tpu.memory_space<vmem>>, %arg3: memref<2x8x4xf32, #tpu.memory_space<vmem>>, %arg4: memref<4x32xf32, #tpu.memory_space<vmem>>, %arg5: memref<1x32xf32, #tpu.memory_space<vmem>>, %arg6: memref<8x32xf32, #tpu.memory_space<vmem>>, %arg7: memref<1x32xf32, #tpu.memory_space<vmem>>, %arg8: memref<2x8x8xf32, #tpu.memory_space<vmem>>, %arg9: memref<2x8x8xf32, #tpu.memory_space<vmem>>, %arg10: memref<2x8x8xf32, #tpu.memory_space<vmem>>, %arg11: memref<2x8x32xf32, #tpu.memory_space<vmem>>) attributes {dimension_semantics = [#tpu.dimension_semantics<parallel>, #tpu.dimension_semantics<arbitrary>], iteration_bounds = array<i64: 2, 1>, scalar_prefetch = 0 : i64, scratch_operands = 1 : i64, tpu.core_type = #tpu.core_type<tc>, window_params = [{transform_indices = @transform_0, window_bounds = array<i64: 2, 8, 4>}, {transform_indices = @transform_1, window_bounds = array<i64: 2, 8, 4>}, {pipeline_mode = #tpu.pipeline_mode<synchronous>, transform_indices = @transform_2, window_bounds = array<i64: 4, 32>}, {pipeline_mode = #tpu.pipeline_mode<synchronous>, transform_indices = @transform_3, window_bounds = array<i64: 1, 32>}, {pipeline_mode = #tpu.pipeline_mode<synchronous>, transform_indices = @transform_4, window_bounds = array<i64: 8, 32>}, {pipeline_mode = #tpu.pipeline_mode<synchronous>, transform_indices = @transform_5, window_bounds = array<i64: 1, 32>}, {transform_indices = @transform_6, window_bounds = array<i64: 2, 8, 8>}, {transform_indices = @transform_7, window_bounds = array<i64: 2, 8, 8>}, {transform_indices = @transform_8, window_bounds = array<i64: 2, 8, 8>}]} {
    %c0_i32 = arith.constant 0 : i32
    %0 = arith.cmpi eq, %arg1, %c0_i32 : i32
    %1 = arith.extui %0 : i1 to i32
    %c0_i32_0 = arith.constant 0 : i32
    %2 = arith.cmpi ne, %1, %c0_i32_0 : i32
    scf.if %2 {
      %c0_15 = arith.constant 0 : index
      %c0_16 = arith.constant 0 : index
      %c0_17 = arith.constant 0 : index
      %18 = vector.load %arg2[%c0_15, %c0_16, %c0_17] : memref<2x8x4xf32, #tpu.memory_space<vmem>>, vector<2x8x4xf32>
      %c0_18 = arith.constant 0 : index
      %c0_19 = arith.constant 0 : index
      %c0_20 = arith.constant 0 : index
      %19 = vector.load %arg3[%c0_18, %c0_19, %c0_20] : memref<2x8x4xf32, #tpu.memory_space<vmem>>, vector<2x8x4xf32>
      %20 = arith.addf %18, %19 : vector<2x8x4xf32>
      %21 = vector.shape_cast %20 : vector<2x8x4xf32> to vector<16x4xf32>
      %c0_21 = arith.constant 0 : index
      %c0_22 = arith.constant 0 : index
      %22 = vector.load %arg4[%c0_21, %c0_22] : memref<4x32xf32, #tpu.memory_space<vmem>>, vector<4x32xf32>
      %cst_23 = arith.constant dense<0.000000e+00> : vector<16x32xf32>
      %23 = tpu.matmul %21, %22, %cst_23 {dimension_numbers = #tpu.dot_dimension_numbers<[1], [0], [0], [1], [0, 0, 1, 1], [], []>} : vector<16x4xf32>, vector<4x32xf32>, vector<16x32xf32> -> vector<16x32xf32>
      %c0_24 = arith.constant 0 : index
      %c0_25 = arith.constant 0 : index
      %24 = vector.load %arg5[%c0_24, %c0_25] : memref<1x32xf32, #tpu.memory_space<vmem>>, vector<1x32xf32>
      %25 = vector.broadcast %24 : vector<1x32xf32> to vector<16x32xf32>
      %26 = arith.addf %23, %25 : vector<16x32xf32>
      %27 = vector.shape_cast %26 : vector<16x32xf32> to vector<2x8x32xf32>
      %cst_26 = arith.constant dense<0.000000e+00> : vector<2x8xf32>
      %28 = vector.multi_reduction <add>, %27, %cst_26 [2] : vector<2x8x32xf32> to vector<2x8xf32>
      %cst_27 = arith.constant 3.200000e+01 : f32
      %29 = vector.broadcast %cst_27 : f32 to vector<2x8xf32>
      %30 = arith.divf %28, %29 : vector<2x8xf32>
      %cst_28 = arith.constant dense<0xFF800000> : vector<2x8xf32>
      %31 = vector.multi_reduction <maximumf>, %27, %cst_28 [2] : vector<2x8x32xf32> to vector<2x8xf32>
      %32 = arith.addf %30, %31 : vector<2x8xf32>
      %cst_29 = arith.constant 5.000000e-01 : f32
      %33 = vector.broadcast %cst_29 : f32 to vector<2x8xf32>
      %34 = arith.mulf %33, %32 : vector<2x8xf32>
      %c0_30 = arith.constant 0 : index
      %c0_31 = arith.constant 0 : index
      %35 = vector.load %arg6[%c0_30, %c0_31] : memref<8x32xf32, #tpu.memory_space<vmem>>, vector<8x32xf32>
      %cst_32 = arith.constant dense<0.000000e+00> : vector<2x32xf32>
      %36 = tpu.matmul %34, %35, %cst_32 {dimension_numbers = #tpu.dot_dimension_numbers<[1], [0], [0], [1], [0, 0, 1, 1], [], []>} : vector<2x8xf32>, vector<8x32xf32>, vector<2x32xf32> -> vector<2x32xf32>
      %c0_33 = arith.constant 0 : index
      %c0_34 = arith.constant 0 : index
      %37 = vector.load %arg7[%c0_33, %c0_34] : memref<1x32xf32, #tpu.memory_space<vmem>>, vector<1x32xf32>
      %38 = vector.broadcast %37 : vector<1x32xf32> to vector<2x32xf32>
      %39 = arith.addf %36, %38 : vector<2x32xf32>
      %cst_35 = arith.constant 0.000000e+00 : f32
      %40 = vector.broadcast %cst_35 : f32 to vector<2x32xf32>
      %41 = arith.maximumf %39, %40 : vector<2x32xf32>
      %cst_36 = arith.constant 0.707106769 : f32
      %42 = vector.broadcast %cst_36 : f32 to vector<2x32xf32>
      %43 = arith.mulf %41, %42 : vector<2x32xf32>
      %44 = vector.shape_cast %43 : vector<2x32xf32> to vector<2x1x32xf32>
      %45 = vector.broadcast %44 : vector<2x1x32xf32> to vector<2x8x32xf32>
      %46 = arith.mulf %27, %45 : vector<2x8x32xf32>
      %c0_37 = arith.constant 0 : index
      %c0_38 = arith.constant 0 : index
      %c0_39 = arith.constant 0 : index
      %47 = vector.load %arg11[%c0_37, %c0_38, %c0_39] : memref<2x8x32xf32, #tpu.memory_space<vmem>>, vector<2x8x32xf32>
      tpu.vector_store %arg11[%c0_37, %c0_38, %c0_39], %46 {strides = array<i32>} : memref<2x8x32xf32, #tpu.memory_space<vmem>>, vector<2x8x32xf32>,
    } else {
    }
    %c0 = arith.constant 0 : index
    %c0_1 = arith.constant 0 : index
    %c0_2 = arith.constant 0 : index
    %3 = vector.load %arg11[%c0, %c0_1, %c0_2] : memref<2x8x32xf32, #tpu.memory_space<vmem>>, vector<2x8x32xf32>
    "tpu.trace_start"() <{level = 10 : i32, message = "bqh,bkh->bqk"}> : () -> ()
    %cst = arith.constant dense<0.000000e+00> : vector<2x8x8xf32>
    %4 = tpu.matmul %3, %3, %cst {dimension_numbers = #tpu.dot_dimension_numbers<[2], [2], [1], [1], [0, 0, 0, 1, 1, 1], [0], [0]>} : vector<2x8x32xf32>, vector<2x8x32xf32>, vector<2x8x8xf32> -> vector<2x8x8xf32>
    "tpu.trace_stop"() : () -> ()
    %cst_3 = arith.constant 1.000000e+00 : f32
    %5 = vector.broadcast %cst_3 : f32 to vector<2x8x8xf32>
    %6 = arith.mulf %5, %4 : vector<2x8x8xf32>
    %7 = math.tanh %6 : vector<2x8x8xf32>
    %cst_4 = arith.constant 0.000000e+00 : f32
    %8 = vector.broadcast %cst_4 : f32 to vector<2x8x8xf32>
    %9 = arith.maximumf %7, %8 : vector<2x8x8xf32>
    %cst_5 = arith.constant dense<0.000000e+00> : vector<2x8xf32>
    %10 = vector.multi_reduction <add>, %9, %cst_5 [2] : vector<2x8x8xf32> to vector<2x8xf32>
    %11 = vector.shape_cast %10 : vector<2x8xf32> to vector<2x8x1xf32>
    %12 = tpu.reciprocal %11 : vector<2x8x1xf32> -> vector<2x8x1xf32>
    %c0_6 = arith.constant 0 : index
    %c0_7 = arith.constant 0 : index
    %c0_8 = arith.constant 0 : index
    %13 = vector.load %arg10[%c0_6, %c0_7, %c0_8] : memref<2x8x8xf32, #tpu.memory_space<vmem>>, vector<2x8x8xf32>
    tpu.vector_store %arg10[%c0_6, %c0_7, %c0_8], %4 {strides = array<i32>} : memref<2x8x8xf32, #tpu.memory_space<vmem>>, vector<2x8x8xf32>,
    %c0_9 = arith.constant 0 : index
    %c0_10 = arith.constant 0 : index
    %c0_11 = arith.constant 0 : index
    %14 = vector.load %arg9[%c0_9, %c0_10, %c0_11] : memref<2x8x8xf32, #tpu.memory_space<vmem>>, vector<2x8x8xf32>
    tpu.vector_store %arg9[%c0_9, %c0_10, %c0_11], %9 {strides = array<i32>} : memref<2x8x8xf32, #tpu.memory_space<vmem>>, vector<2x8x8xf32>,
    %15 = vector.broadcast %12 : vector<2x8x1xf32> to vector<2x8x8xf32>
    %16 = arith.mulf %9, %15 : vector<2x8x8xf32>
    %c0_12 = arith.constant 0 : index
    %c0_13 = arith.constant 0 : index
    %c0_14 = arith.constant 0 : index
    %17 = vector.load %arg8[%c0_12, %c0_13, %c0_14] : memref<2x8x8xf32, #tpu.memory_space<vmem>>, vector<2x8x8xf32>
    tpu.vector_store %arg8[%c0_12, %c0_13, %c0_14], %16 {strides = array<i32>} : memref<2x8x8xf32, #tpu.memory_space<vmem>>, vector<2x8x8xf32>,
    return
  }
  func.func @transform_0(%arg0: i32, %arg1: i32) -> (i32, i32, i32) {
    %c0_i32 = arith.constant 0 : i32
    %c0_i32_0 = arith.constant 0 : i32
    %c0_i32_1 = arith.constant 0 : i32
    return %arg0, %c0_i32, %c0_i32_0 : i32, i32, i32
  }
  func.func @transform_1(%arg0: i32, %arg1: i32) -> (i32, i32, i32) {
    %c0_i32 = arith.constant 0 : i32
    %c0_i32_0 = arith.constant 0 : i32
    %c0_i32_1 = arith.constant 0 : i32
    return %arg0, %c0_i32, %c0_i32_0 : i32, i32, i32
  }
  func.func @transform_2(%arg0: i32, %arg1: i32) -> (i32, i32) {
    %c0_i32 = arith.constant 0 : i32
    %c0_i32_0 = arith.constant 0 : i32
    %c0_i32_1 = arith.constant 0 : i32
    return %c0_i32, %c0_i32_0 : i32, i32
  }
  func.func @transform_3(%arg0: i32, %arg1: i32) -> (i32, i32) {
    %c0_i32 = arith.constant 0 : i32
    %c0_i32_0 = arith.constant 0 : i32
    %c0_i32_1 = arith.constant 0 : i32
    return %c0_i32, %c0_i32_0 : i32, i32
  }
  func.func @transform_4(%arg0: i32, %arg1: i32) -> (i32, i32) {
    %c0_i32 = arith.constant 0 : i32
    %c0_i32_0 = arith.constant 0 : i32
    %c0_i32_1 = arith.constant 0 : i32
    return %c0_i32, %c0_i32_0 : i32, i32
  }
  func.func @transform_5(%arg0: i32, %arg1: i32) -> (i32, i32) {
    %c0_i32 = arith.constant 0 : i32
    %c0_i32_0 = arith.constant 0 : i32
    %c0_i32_1 = arith.constant 0 : i32
    return %c0_i32, %c0_i32_0 : i32, i32
  }
  func.func @transform_6(%arg0: i32, %arg1: i32) -> (i32, i32, i32) {
    %c0_i32 = arith.constant 0 : i32
    %c0_i32_0 = arith.constant 0 : i32
    return %arg0, %arg1, %c0_i32 : i32, i32, i32
  }
  func.func @transform_7(%arg0: i32, %arg1: i32) -> (i32, i32, i32) {
    %c0_i32 = arith.constant 0 : i32
    %c0_i32_0 = arith.constant 0 : i32
    return %arg0, %arg1, %c0_i32 : i32, i32, i32
  }
  func.func @transform_8(%arg0: i32, %arg1: i32) -> (i32, i32, i32) {
    %c0_i32 = arith.constant 0 : i32
    %c0_i32_0 = arith.constant 0 : i32
    return %arg0, %arg1, %c0_i32 : i32, i32, i32
  }
}

</mosaic_0001>

<llo_original>
// kernel: tpu_custom_call.1
$region0: #{tpu_custom_call.1}
  #allocation0 [shape = 'u32[]', space=smem, size = 0x4, offset = 0x4, fixed_abs, tag = 'smem constant byte address 0x4 - core index']
  #allocation1 [shape = 'u32[144,128]{1,0:T(1,128)}', space=vmem, size = 0x12000, scoped, tag = 'internal scratch']
  #allocation2 [shape = 'f32[2,8,32]{2,1,0:T(8,128)}', space=vmem, size = 0x2000, scoped, tag = 'scratch operand']
  %s0 = inlined_call_operand.vmem [shape: f32[4,8,4], index: 0, kind: input, shape index: {}]
  %s1 = inlined_call_operand.vmem [shape: f32[4,8,4], index: 1, kind: input, shape index: {}]
  %s2 = inlined_call_operand.vmem [shape: f32[4,32], index: 2, kind: input, shape index: {}]
  %s3 = inlined_call_operand.vmem [shape: f32[1,32], index: 3, kind: input, shape index: {}]
  %s4 = inlined_call_operand.vmem [shape: f32[8,32], index: 4, kind: input, shape index: {}]
  %s5 = inlined_call_operand.vmem [shape: f32[1,32], index: 5, kind: input, shape index: {}]
  %s6 = inlined_call_operand.hbm [shape: f32[4,8,8], index: 6, kind: output, shape index: {0}]
  %s7 = inlined_call_operand.hbm [shape: f32[4,8,8], index: 7, kind: output, shape index: {1}]
  %s8 = inlined_call_operand.hbm [shape: f32[4,8,8], index: 8, kind: output, shape index: {2}]
  %9 = xla_tuple %s6, %s7, %s8
  %s10 = sld [smem:[#allocation0]]
  $region77: #{tpu_custom_call.1} parent=0
    _
  %s12 = ssub.s32 1, %s10
  %s13 = scalar_select 0, %s12, %s10
  $region1: #{tpu_custom_call.1} parent=0
    #allocation3 [shape = 'u8[16384]{0}', space=vmem, size = 0x4000, scoped, tag = 'output window, operand 0']
    #allocation4 [shape = 's32[2]{0}', space=sflag, size = 0x8, scoped, tag = 'scoped memory for tpu_custom_call.1']
    #allocation5 [shape = 'u8[16384]{0}', space=vmem, size = 0x4000, scoped, tag = 'output window, operand 1']
    #allocation6 [shape = 's32[2]{0}', space=sflag, size = 0x8, scoped, tag = 'scoped memory for tpu_custom_call.1']
    #allocation7 [shape = 'u8[16384]{0}', space=vmem, size = 0x4000, scoped, tag = 'output window, operand 2']
    %14 = vsyncpa [#allocation4], 0
    %s15 = scalar_lea.sflag [#allocation4], 1
    %16 = vsyncpa %s15, 0
    %17 = vsyncpa [#allocation6], 0
    %s18 = scalar_lea.sflag [#allocation6], 1
    %19 = vsyncpa %s18, 0
    loop: start=0, step=1, limit=4
    $region2: #{tpu_custom_call.1} parent=1 // loop_pre_header
      _
    $region3: #{tpu_custom_call.1} parent=1 // loop_header
      %s21 = sphi 0, %s25
      %p22 = scmp.ge.s32.totalorder %s21, 4
      %s28 = sphi 0, %s40
      %s29 = sphi 0, %s36
      %s30 = sphi 0, %s28
      %s31 = sphi 0, %s29
      %s32 = sphi 0, %s30
      %s33 = sphi 0, %s31
      %s43 = sphi 0, %s45
      %s46 = sphi 0, %s43
      %s47 = sphi 0, %s46
      %s63 = sphi 0, %s47
      %s69 = sphi 0, %s71
      %s72 = sphi 0, %s69
      %s73 = sphi 0, %s72
      %s89 = sphi 0, %s73
      %s93 = sphi 0, %s93
      %s95 = sphi 0, %s93
      %s96 = sphi 0, %s95
      %s110 = sphi 0, %s96
      %s114 = sphi 0, %s114
      %s116 = sphi 0, %s114
      %s117 = sphi 0, %s116
      %s131 = sphi 0, %s117
      %s135 = sphi 0, %s135
      %s137 = sphi 0, %s135
      %s138 = sphi 0, %s137
      %s152 = sphi 0, %s138
      %s156 = sphi 0, %s156
      %s158 = sphi 0, %s156
      %s159 = sphi 0, %s158
      %s173 = sphi 0, %s159
      %s181 = sphi 0, %s183
      %s184 = sphi 0, %s181
      %s185 = sphi 0, %s184
      %s201 = sphi 0, %s185
      %s209 = sphi 0, %s211
      %s212 = sphi 0, %s209
      %s213 = sphi 0, %s212
      %s229 = sphi 0, %s213
      %s237 = sphi 0, %s239
      %s240 = sphi 0, %s237
      %s241 = sphi 0, %s240
      %s257 = sphi 0, %s241
    $region4: #{tpu_custom_call.1} parent=1 // loop_header_branch
      %24 = sbr.rel (%p22) target = $region8
    $region5: #{tpu_custom_call.1} parent=1 // loop_body
      %s26 = ssub.s32 %s21, 1
      %s27 = ssub.s32 %s21, 2
      %s34 = sadd.s32 1, %s29
      %p35 = scmp.ge.s32.totalorder %s34, 1
      %s36 = scalar_select %p35, 0, %s34
      %s37 = sadd.s32 1, %s28
      %s38 = scalar_select %p35, %s37, %s28
      %p39 = scmp.ge.s32.totalorder %s38, 2
      %s40 = scalar_select %p39, 0, %s38
      %s41 = ssub.s32 %s28, %s40
      %p42 = scmp.eq.s32.totalorder %s41, 0
      %s44 = sadd.s32 %s43, 1
      %s45 = scalar_select %p42, %s43, %s44
      %p48 = pneg %p42
      %p49 = scmp.eq.s32.totalorder %s21, 1
      %p50 = por %p48, %p49
      %p51 = scmp.ne.s32.totalorder %s43, %s46
      %p52 = scmp.eq.s32.totalorder %s21, 0
      %p53 = por %p51, %p52
      %p54 = scmp.ne.s32.totalorder %s43, %s46
      %p55 = scmp.eq.s32.totalorder %s26, 1
      %p56 = por %p54, %p55
      %p57 = scmp.ne.s32.totalorder %s46, %s47
      %p58 = scmp.eq.s32.totalorder %s26, 0
      %p59 = por %p57, %p58
      %p60 = scmp.ne.s32.totalorder %s46, %s47
      %p61 = scmp.eq.s32.totalorder %s27, 1
      %p62 = por %p60, %p61
      %p64 = scmp.ne.s32.totalorder %s47, %s63
      %p65 = scmp.eq.s32.totalorder %s27, 0
      %p66 = por %p64, %p65
      %s67 = ssub.s32 %s28, %s40
      %p68 = scmp.eq.s32.totalorder %s67, 0
      %s70 = sadd.s32 %s69, 1
      %s71 = scalar_select %p68, %s69, %s70
      %p74 = pneg %p68
      %p75 = scmp.eq.s32.totalorder %s21, 1
      %p76 = por %p74, %p75
      %p77 = scmp.ne.s32.totalorder %s69, %s72
      %p78 = scmp.eq.s32.totalorder %s21, 0
      %p79 = por %p77, %p78
      %p80 = scmp.ne.s32.totalorder %s69, %s72
      %p81 = scmp.eq.s32.totalorder %s26, 1
      %p82 = por %p80, %p81
      %p83 = scmp.ne.s32.totalorder %s72, %s73
      %p84 = scmp.eq.s32.totalorder %s26, 0
      %p85 = por %p83, %p84
      %p86 = scmp.ne.s32.totalorder %s72, %s73
      %p87 = scmp.eq.s32.totalorder %s27, 1
      %p88 = por %p86, %p87
      %p90 = scmp.ne.s32.totalorder %s73, %s89
      %p91 = scmp.eq.s32.totalorder %s27, 0
      %p92 = por %p90, %p91
      %s94 = sadd.s32 %s93, 1
      %p97 = scmp.eq.s32.totalorder %s21, 1
      %p98 = scmp.ne.s32.totalorder %s93, %s95
      %p99 = scmp.eq.s32.totalorder %s21, 0
      %p100 = por %p98, %p99
      %p101 = scmp.ne.s32.totalorder %s93, %s95
      %p102 = scmp.eq.s32.totalorder %s26, 1
      %p103 = por %p101, %p102
      %p104 = scmp.ne.s32.totalorder %s95, %s96
      %p105 = scmp.eq.s32.totalorder %s26, 0
      %p106 = por %p104, %p105
      %p107 = scmp.ne.s32.totalorder %s95, %s96
      %p108 = scmp.eq.s32.totalorder %s27, 1
      %p109 = por %p107, %p108
      %p111 = scmp.ne.s32.totalorder %s96, %s110
      %p112 = scmp.eq.s32.totalorder %s27, 0
      %p113 = por %p111, %p112
      %s115 = sadd.s32 %s114, 1
      %p118 = scmp.eq.s32.totalorder %s21, 1
      %p119 = scmp.ne.s32.totalorder %s114, %s116
      %p120 = scmp.eq.s32.totalorder %s21, 0
      %p121 = por %p119, %p120
      %p122 = scmp.ne.s32.totalorder %s114, %s116
      %p123 = scmp.eq.s32.totalorder %s26, 1
      %p124 = por %p122, %p123
      %p125 = scmp.ne.s32.totalorder %s116, %s117
      %p126 = scmp.eq.s32.totalorder %s26, 0
      %p127 = por %p125, %p126
      %p128 = scmp.ne.s32.totalorder %s116, %s117
      %p129 = scmp.eq.s32.totalorder %s27, 1
      %p130 = por %p128, %p129
      %p132 = scmp.ne.s32.totalorder %s117, %s131
      %p133 = scmp.eq.s32.totalorder %s27, 0
      %p134 = por %p132, %p133
      %s136 = sadd.s32 %s135, 1
      %p139 = scmp.eq.s32.totalorder %s21, 1
      %p140 = scmp.ne.s32.totalorder %s135, %s137
      %p141 = scmp.eq.s32.totalorder %s21, 0
      %p142 = por %p140, %p141
      %p143 = scmp.ne.s32.totalorder %s135, %s137
      %p144 = scmp.eq.s32.totalorder %s26, 1
      %p145 = por %p143, %p144
      %p146 = scmp.ne.s32.totalorder %s137, %s138
      %p147 = scmp.eq.s32.totalorder %s26, 0
      %p148 = por %p146, %p147
      %p149 = scmp.ne.s32.totalorder %s137, %s138
      %p150 = scmp.eq.s32.totalorder %s27, 1
      %p151 = por %p149, %p150
      %p153 = scmp.ne.s32.totalorder %s138, %s152
      %p154 = scmp.eq.s32.totalorder %s27, 0
      %p155 = por %p153, %p154
      %s157 = sadd.s32 %s156, 1
      %p160 = scmp.eq.s32.totalorder %s21, 1
      %p161 = scmp.ne.s32.totalorder %s156, %s158
      %p162 = scmp.eq.s32.totalorder %s21, 0
      %p163 = por %p161, %p162
      %p164 = scmp.ne.s32.totalorder %s156, %s158
      %p165 = scmp.eq.s32.totalorder %s26, 1
      %p166 = por %p164, %p165
      %p167 = scmp.ne.s32.totalorder %s158, %s159
      %p168 = scmp.eq.s32.totalorder %s26, 0
      %p169 = por %p167, %p168
      %p170 = scmp.ne.s32.totalorder %s158, %s159
      %p171 = scmp.eq.s32.totalorder %s27, 1
      %p172 = por %p170, %p171
      %p174 = scmp.ne.s32.totalorder %s159, %s173
      %p175 = scmp.eq.s32.totalorder %s27, 0
      %p176 = por %p174, %p175
      %s177 = ssub.s32 %s28, %s40
      %s178 = ssub.s32 %s29, %s36
      %s179 = sor.u32 %s177, %s178
      %p180 = scmp.eq.s32.totalorder %s179, 0
      %s182 = sadd.s32 %s181, 1
      %s183 = scalar_select %p180, %s181, %s182
      %p186 = pneg %p180
      %p187 = scmp.eq.s32.totalorder %s21, 1
      %p188 = por %p186, %p187
      %p189 = scmp.ne.s32.totalorder %s181, %s184
      %p190 = scmp.eq.s32.totalorder %s21, 0
      %p191 = por %p189, %p190
      %p192 = scmp.ne.s32.totalorder %s181, %s184
      %p193 = scmp.eq.s32.totalorder %s26, 1
      %p194 = por %p192, %p193
      %p195 = scmp.ne.s32.totalorder %s184, %s185
      %p196 = scmp.eq.s32.totalorder %s26, 0
      %p197 = por %p195, %p196
      %p198 = scmp.ne.s32.totalorder %s184, %s185
      %p199 = scmp.eq.s32.totalorder %s27, 1
      %p200 = por %p198, %p199
      %p202 = scmp.ne.s32.totalorder %s185, %s201
      %p203 = scmp.eq.s32.totalorder %s27, 0
      %p204 = por %p202, %p203
      %s205 = ssub.s32 %s28, %s40
      %s206 = ssub.s32 %s29, %s36
      %s207 = sor.u32 %s205, %s206
      %p208 = scmp.eq.s32.totalorder %s207, 0
      %s210 = sadd.s32 %s209, 1
      %s211 = scalar_select %p208, %s209, %s210
      %p214 = pneg %p208
      %p215 = scmp.eq.s32.totalorder %s21, 1
      %p216 = por %p214, %p215
      %p217 = scmp.ne.s32.totalorder %s209, %s212
      %p218 = scmp.eq.s32.totalorder %s21, 0
      %p219 = por %p217, %p218
      %p220 = scmp.ne.s32.totalorder %s209, %s212
      %p221 = scmp.eq.s32.totalorder %s26, 1
      %p222 = por %p220, %p221
      %p223 = scmp.ne.s32.totalorder %s212, %s213
      %p224 = scmp.eq.s32.totalorder %s26, 0
      %p225 = por %p223, %p224
      %p226 = scmp.ne.s32.totalorder %s212, %s213
      %p227 = scmp.eq.s32.totalorder %s27, 1
      %p228 = por %p226, %p227
      %p230 = scmp.ne.s32.totalorder %s213, %s229
      %p231 = scmp.eq.s32.totalorder %s27, 0
      %p232 = por %p230, %p231
      %s233 = ssub.s32 %s28, %s40
      %s234 = ssub.s32 %s29, %s36
      %s235 = sor.u32 %s233, %s234
      %p236 = scmp.eq.s32.totalorder %s235, 0
      %s238 = sadd.s32 %s237, 1
      %s239 = scalar_select %p236, %s237, %s238
      %p242 = pneg %p236
      %p243 = scmp.eq.s32.totalorder %s21, 1
      %p244 = por %p242, %p243
      %p245 = scmp.ne.s32.totalorder %s237, %s240
      %p246 = scmp.eq.s32.totalorder %s21, 0
      %p247 = por %p245, %p246
      %p248 = scmp.ne.s32.totalorder %s237, %s240
      %p249 = scmp.eq.s32.totalorder %s26, 1
      %p250 = por %p248, %p249
      %p251 = scmp.ne.s32.totalorder %s240, %s241
      %p252 = scmp.eq.s32.totalorder %s26, 0
      %p253 = por %p251, %p252
      %p254 = scmp.ne.s32.totalorder %s240, %s241
      %p255 = scmp.eq.s32.totalorder %s27, 1
      %p256 = por %p254, %p255
      %p258 = scmp.ne.s32.totalorder %s241, %s257
      %p259 = scmp.eq.s32.totalorder %s27, 0
      %p260 = por %p258, %p259
      %p261 = scmp.le.s32.totalorder 1, %s21
      %p262 = scmp.lt.s32.totalorder %s21, 3
      %p263 = pnand %p261, %p262
      %p264 = pneg %p263
      // Predicated region
      $region9: #{tpu_custom_call.1} parent=5 // pred_check
        _
      $region10: #{tpu_custom_call.1} parent=5 // pred_check_branch
        %266 = sbr.rel (%p263) target = $region12
      $region11: #{tpu_custom_call.1} parent=5 // pred_region
        %s267 = ssub.s32 %s21, 1
        // Predicated region
        $region13: #{tpu_custom_call.1} parent=11 // pred_check
          %p268 = pneg %p106
        $region14: #{tpu_custom_call.1} parent=11 // pred_check_branch
          %270 = sbr.rel (%p268) target = $region16
        $region15: #{tpu_custom_call.1} parent=11 // pred_region
          _
        $region16: #{tpu_custom_call.1} parent=11 // pred_fallthru
          _
        // Predicated region
        $region17: #{tpu_custom_call.1} parent=11 // pred_check
          %p271 = pneg %p127
        $region18: #{tpu_custom_call.1} parent=11 // pred_check_branch
          %273 = sbr.rel (%p271) target = $region20
        $region19: #{tpu_custom_call.1} parent=11 // pred_region
          _
        $region20: #{tpu_custom_call.1} parent=11 // pred_fallthru
          _
        // Predicated region
        $region21: #{tpu_custom_call.1} parent=11 // pred_check
          %p274 = pneg %p148
        $region22: #{tpu_custom_call.1} parent=11 // pred_check_branch
          %276 = sbr.rel (%p274) target = $region24
        $region23: #{tpu_custom_call.1} parent=11 // pred_region
          _
        $region24: #{tpu_custom_call.1} parent=11 // pred_fallthru
          _
        // Predicated region
        $region25: #{tpu_custom_call.1} parent=11 // pred_check
          %p277 = pneg %p169
        $region26: #{tpu_custom_call.1} parent=11 // pred_check_branch
          %279 = sbr.rel (%p277) target = $region28
        $region27: #{tpu_custom_call.1} parent=11 // pred_region
          _
        $region28: #{tpu_custom_call.1} parent=11 // pred_fallthru
          _
      $region12: #{tpu_custom_call.1} parent=5 // pred_fallthru
        _
      %p280 = scmp.lt.s32.totalorder %s21, 2
      // Predicated region
      $region29: #{tpu_custom_call.1} parent=5 // pred_check
        %p281 = pneg %p280
      $region30: #{tpu_custom_call.1} parent=5 // pred_check_branch
        %283 = sbr.rel (%p281) target = $region32
      $region31: #{tpu_custom_call.1} parent=5 // pred_region
        // Predicated region
        $region33: #{tpu_custom_call.1} parent=31 // pred_check
          %p284 = pneg %p53
        $region34: #{tpu_custom_call.1} parent=31 // pred_check_branch
          %286 = sbr.rel (%p284) target = $region36
        $region35: #{tpu_custom_call.1} parent=31 // pred_region
          %s287 = smul.u32 2, %s28
          %p288 = scmp.lt.s32.totalorder %s287, 3
          %s289 = scalar_select %p288, %s287, 3
          %s290 = smul.addr %s289, 8
          %s291 = scalar_lea.vmem %s0, %s290
          %s292 = smul.u32 2, %s28
        $region36: #{tpu_custom_call.1} parent=31 // pred_fallthru
          _
        // Predicated region
        $region37: #{tpu_custom_call.1} parent=31 // pred_check
          %p293 = pneg %p79
        $region38: #{tpu_custom_call.1} parent=31 // pred_check_branch
          %295 = sbr.rel (%p293) target = $region40
        $region39: #{tpu_custom_call.1} parent=31 // pred_region
          %s296 = smul.u32 2, %s28
          %p297 = scmp.lt.s32.totalorder %s296, 3
          %s298 = scalar_select %p297, %s296, 3
          %s299 = smul.addr %s298, 8
          %s300 = scalar_lea.vmem %s1, %s299
          %s301 = smul.u32 2, %s28
        $region40: #{tpu_custom_call.1} parent=31 // pred_fallthru
          _
      $region32: #{tpu_custom_call.1} parent=5 // pred_fallthru
        _
      %p302 = scmp.le.s32.totalorder 1, %s21
      %p303 = scmp.lt.s32.totalorder %s21, 3
      %p304 = pnand %p302, %p303
      %p305 = pneg %p304
      // Predicated region
      $region41: #{tpu_custom_call.1} parent=5 // pred_check
        _
      $region42: #{tpu_custom_call.1} parent=5 // pred_check_branch
        %307 = sbr.rel (%p304) target = $region44
      $region43: #{tpu_custom_call.1} parent=5 // pred_region
        %s308 = ssub.s32 %s21, 1
        %s309 = smul.u32 2, %s30
        %p310 = scmp.lt.s32.totalorder %s309, 3
        %s311 = scalar_select %p310, %s309, 3
        %s312 = smul.addr %s311, 8
        %s313 = scalar_lea.vmem %s0, %s312
        %p314 = pneg %p59
        %p315 = pneg %p56
        %s316 = smul.u32 2, %s30
        %p317 = scmp.lt.s32.totalorder %s316, 3
        %s318 = scalar_select %p317, %s316, 3
        %s319 = smul.addr %s318, 8
        %s320 = scalar_lea.vmem %s1, %s319
        %p321 = pneg %p85
        %p322 = pneg %p82
        %p323 = pneg %p106
        %p324 = pneg %p103
        %p325 = pneg %p127
        %p326 = pneg %p124
        %p327 = pneg %p148
        %p328 = pneg %p145
        %p329 = pneg %p169
        %p330 = pneg %p166
        %p331 = pneg %p197
        %p332 = pneg %p194
        %s333 = sand.u32 %s184, 1
        %s334 = scalar_lea.sflag [#allocation4], %s333
        %s335 = sand.u32 %s184, 1
        %s336 = smul.addr %s335, 16
        %s337 = scalar_lea.vmem [#allocation3], %s336
        %p338 = pneg %p225
        %p339 = pneg %p222
        %s340 = sand.u32 %s26, 1
        %s341 = scalar_lea.sflag [#allocation6], %s340
        %s342 = sand.u32 %s212, 1
        %s343 = smul.addr %s342, 16
        %s344 = scalar_lea.vmem [#allocation5], %s343
        %p345 = pneg %p253
        %p346 = pneg %p250
        %s347 = sand.u32 %s26, 1
        %s348 = scalar_lea.sflag [#allocation6], %s347
        %s349 = sand.u32 %s240, 1
        %s350 = smul.addr %s349, 16
        %s351 = scalar_lea.vmem [#allocation7], %s350
        %s352 = smul.u32 2, %s30
        %p353 = scmp.lt.s32.totalorder %s352, 3
        %s354 = scalar_select %p353, %s352, 3
        %s355 = smul.addr %s354, 8
        %s356 = scalar_lea.vmem %s0, %s355
        %s357 = smul.u32 2, %s30
        %s358 = smul.u32 2, %s30
        %p359 = scmp.lt.s32.totalorder %s358, 3
        %s360 = scalar_select %p359, %s358, 3
        %s361 = smul.addr %s360, 8
        %s362 = scalar_lea.vmem %s1, %s361
        %s363 = smul.u32 2, %s30
        %s364 = smul.u32 2, %s30
        %s365 = smul.u32 2, %s30
        %s366 = smul.u32 2, %s30
        %p367 = scmp.eq.s32.totalorder %s31, 0
        // Predicated region
        $region45: #{tpu_custom_call.1} parent=43 // pred_check
          %p368 = pneg %p367
        $region46: #{tpu_custom_call.1} parent=43 // pred_check_branch
          %370 = sbr.rel (%p368) target = $region48
        $region47: #{tpu_custom_call.1} parent=43 // pred_region
          %v371 = vld [vmem:[%s356] sm:$0xff]
          %v372 = vld [vmem:[%s356 + $0x8] sm:$0xff]
          %v373 = vld [vmem:[%s362] sm:$0xff]
          %v374 = vld [vmem:[%s362 + $0x8] sm:$0xff]
          %v375 = vadd.f32 %v371, %v373
          %v376 = vadd.f32 %v372, %v374
          %v377 = vld [vmem:[%s2] sm:$0xf]
          %v378 = vld [vmem:[%s3] sm:$0x1]
          %v380 = vlaneseq
          %v381 = vshrl.u32 %v380, 7
          %v382 = vsub.s32 0, %v381
          %v383 = vrot.slane %v378, %v382
          %vm385 = vcmask 31744
          %v387 = vsel %vm385, %v375, 0
          %v390 = vsel %vm385, %v376, 0
          %vm392 = vcmask 1043456
          %v394 = vsel %vm392, %v377, 0
          %396 = vmatprep.subr.mxu0 0.0
          %397 = vmatpush1.msra.mxu0 0.0
          %398 = vmatprep.subr.mxu0 0.0
          %399 = vmatpush1.msra.mxu0 0.0
          %400 = vmatprep.subr.mxu0 0.0
          %401 = vmatpush1.msra.mxu0 0.0
          %402 = vmatprep.subr.mxu0 0.0
          %403 = vmatpush1.msra.mxu0 0.0
          %404 = vmatprep.subr.mxu0 0.0
          %405 = vmatpush1.msra.mxu0 0.0
          %406 = vmatprep.subr.mxu0 0.0
          %407 = vmatpush1.msra.mxu0 0.0
          %408 = vmatprep.subr.mxu0 0.0
          %409 = vmatpush1.msra.mxu0 0.0
          %410 = vmatprep.subr.mxu0 0.0
          %411 = vmatpush1.msra.mxu0 0.0
          %412 = vmatprep.subr.mxu0 0.0
          %413 = vmatpush1.msra.mxu0 0.0
          %414 = vmatprep.subr.mxu0 0.0
          %415 = vmatpush1.msra.mxu0 0.0
          %416 = vmatprep.subr.mxu0 0.0
          %417 = vmatpush1.msra.mxu0 0.0
          %418 = vmatprep.subr.mxu0 0.0
          %419 = vmatpush1.msra.mxu0 0.0
          %420 = vmatprep.subr.mxu0 0.0
          %421 = vmatpush1.msra.mxu0 0.0
          %422 = vmatprep.subr.mxu0 0.0
          %423 = vmatpush1.msra.mxu0 0.0
          %424 = vmatprep.subr.mxu0 0.0
          %425 = vmatpush1.msra.mxu0 0.0
          %426 = vmatprep.subr.mxu0 0.0
          %427 = vmatpush1.msra.mxu0 %v394
          %428 = vmatprep.subr.mxu0 0.0
          %429 = vmatpush2.msra.mxu0 0.0
          %430 = vmatprep.subr.mxu0 0.0
          %431 = vmatpush2.msra.mxu0 0.0
          %432 = vmatprep.subr.mxu0 0.0
          %433 = vmatpush2.msra.mxu0 0.0
          %434 = vmatprep.subr.mxu0 0.0
          %435 = vmatpush2.msra.mxu0 0.0
          %436 = vmatprep.subr.mxu0 0.0
          %437 = vmatpush2.msra.mxu0 0.0
          %438 = vmatprep.subr.mxu0 0.0
          %439 = vmatpush2.msra.mxu0 0.0
          %440 = vmatprep.subr.mxu0 0.0
          %441 = vmatpush2.msra.mxu0 0.0
          %442 = vmatprep.subr.mxu0 0.0
          %443 = vmatpush2.msra.mxu0 0.0
          %444 = vmatprep.subr.mxu0 0.0
          %445 = vmatpush2.msra.mxu0 0.0
          %446 = vmatprep.subr.mxu0 0.0
          %447 = vmatpush2.msra.mxu0 0.0
          %448 = vmatprep.subr.mxu0 0.0
          %449 = vmatpush2.msra.mxu0 0.0
          %450 = vmatprep.subr.mxu0 0.0
          %451 = vmatpush2.msra.mxu0 0.0
          %452 = vmatprep.subr.mxu0 0.0
          %453 = vmatpush2.msra.mxu0 0.0
          %454 = vmatprep.subr.mxu0 0.0
          %455 = vmatpush2.msra.mxu0 0.0
          %456 = vmatprep.subr.mxu0 0.0
          %457 = vmatpush2.msra.mxu0 0.0
          %458 = vmatprep.subr.mxu0 0.0
          %459 = vmatpush2.msra.mxu0 0.0
          %460 = vmatprep.mubr.f32.mxu0 0.0
          %461 = vmatmul.mubr.f32.gmra.mxu0 %v387
          %v462 = vpop.f32.mrf.mxu0
          %v463 = vadd.f32 %v383, %v462
          %v464 = vpop.f32.mrf.mxu0
          %465 = vmatprep.mubr.f32.mxu0 0.0
          %466 = vmatmul.mubr.f32.gmra.mxu0 %v390
          %v467 = vpop.f32.mrf.mxu0
          %v468 = vadd.f32 %v383, %v467
          %v469 = vpop.f32.mrf.mxu0
          %470 = vdwg.mxu0
          %vm471 = vcmask 261120
          %v472 = vsel %vm471, %v463, 0.0
          %473 = vadd.xlane.f32.xlu0 %v472
          %v474 = vpop.xlane.xlu0 %473
          %v475 = vsel %vm471, %v468, 0.0
          %476 = vadd.xlane.f32.xlu0 %v475
          %v477 = vpop.xlane.xlu0 %476
          %v478 = vrcp.pop 32.0
          %v479 = vmul.f32 %v474, %v478
          %v480 = vmul.f32 %v477, %v478
          %v481 = vsel %vm471, %v463, -inf
          %482 = vmax.xlane.f32.xlu0 %v481
          %v483 = vpop.xlane.xlu0 %482
          %v484 = vsel %vm471, %v468, -inf
          %485 = vmax.xlane.f32.xlu0 %v484
          %v486 = vpop.xlane.xlu0 %485
          %v487 = vadd.f32 %v479, %v483
          %v488 = vadd.f32 %v480, %v486
          %v489 = vmul.f32 %v487, 0.5
          %v490 = vmul.f32 %v488, 0.5
          %v491 = vld [vmem:[%s4] sm:$0xff]
          %v492 = vld [vmem:[%s5] sm:$0x1]
          %v494 = vlaneseq
          %v495 = vshrl.u32 %v494, 7
          %v496 = vsub.s32 0, %v495
          %v497 = vrot.slane %v492, %v496
          %v501 = vlaneseq
          %v502 = vand.u32 %v501, 127
          %v503 = vlaneseq
          %v504 = vshrl.u32 %v503, 7
          %v505 = vsub.s32 %v502, %v504
          %v506 = vrot.slane %v489, %v505
          %v507 = vlaneseq
          %v508 = vshrl.u32 %v507, 7
          %v509 = vsub.s32 %v502, %v508
          %v510 = vrot.slane %v490, %v509
          %vm511 = vcmask 1041409
          %v512 = vsel %vm511, %v510, %v506
          %vm513 = vcmask 64512
          %v514 = vsel %vm513, %v512, 0
          %516 = vmatprep.subr.mxu0 0.0
          %517 = vmatpush1.msra.mxu0 0.0
          %518 = vmatprep.subr.mxu0 0.0
          %519 = vmatpush1.msra.mxu0 0.0
          %520 = vmatprep.subr.mxu0 0.0
          %521 = vmatpush1.msra.mxu0 0.0
          %522 = vmatprep.subr.mxu0 0.0
          %523 = vmatpush1.msra.mxu0 0.0
          %524 = vmatprep.subr.mxu0 0.0
          %525 = vmatpush1.msra.mxu0 0.0
          %526 = vmatprep.subr.mxu0 0.0
          %527 = vmatpush1.msra.mxu0 0.0
          %528 = vmatprep.subr.mxu0 0.0
          %529 = vmatpush1.msra.mxu0 0.0
          %530 = vmatprep.subr.mxu0 0.0
          %531 = vmatpush1.msra.mxu0 0.0
          %532 = vmatprep.subr.mxu0 0.0
          %533 = vmatpush1.msra.mxu0 0.0
          %534 = vmatprep.subr.mxu0 0.0
          %535 = vmatpush1.msra.mxu0 0.0
          %536 = vmatprep.subr.mxu0 0.0
          %537 = vmatpush1.msra.mxu0 0.0
          %538 = vmatprep.subr.mxu0 0.0
          %539 = vmatpush1.msra.mxu0 0.0
          %540 = vmatprep.subr.mxu0 0.0
          %541 = vmatpush1.msra.mxu0 0.0
          %542 = vmatprep.subr.mxu0 0.0
          %543 = vmatpush1.msra.mxu0 0.0
          %544 = vmatprep.subr.mxu0 0.0
          %545 = vmatpush1.msra.mxu0 0.0
          %546 = vmatprep.subr.mxu0 0.0
          %547 = vmatpush1.msra.mxu0 %v491
          %548 = vmatprep.subr.mxu0 0.0
          %549 = vmatpush2.msra.mxu0 0.0
          %550 = vmatprep.subr.mxu0 0.0
          %551 = vmatpush2.msra.mxu0 0.0
          %552 = vmatprep.subr.mxu0 0.0
          %553 = vmatpush2.msra.mxu0 0.0
          %554 = vmatprep.subr.mxu0 0.0
          %555 = vmatpush2.msra.mxu0 0.0
          %556 = vmatprep.subr.mxu0 0.0
          %557 = vmatpush2.msra.mxu0 0.0
          %558 = vmatprep.subr.mxu0 0.0
          %559 = vmatpush2.msra.mxu0 0.0
          %560 = vmatprep.subr.mxu0 0.0
          %561 = vmatpush2.msra.mxu0 0.0
          %562 = vmatprep.subr.mxu0 0.0
          %563 = vmatpush2.msra.mxu0 0.0
          %564 = vmatprep.subr.mxu0 0.0
          %565 = vmatpush2.msra.mxu0 0.0
          %566 = vmatprep.subr.mxu0 0.0
          %567 = vmatpush2.msra.mxu0 0.0
          %568 = vmatprep.subr.mxu0 0.0
          %569 = vmatpush2.msra.mxu0 0.0
          %570 = vmatprep.subr.mxu0 0.0
          %571 = vmatpush2.msra.mxu0 0.0
          %572 = vmatprep.subr.mxu0 0.0
          %573 = vmatpush2.msra.mxu0 0.0
          %574 = vmatprep.subr.mxu0 0.0
          %575 = vmatpush2.msra.mxu0 0.0
          %576 = vmatprep.subr.mxu0 0.0
          %577 = vmatpush2.msra.mxu0 0.0
          %578 = vmatprep.subr.mxu0 0.0
          %579 = vmatpush2.msra.mxu0 0.0
          %580 = vmatprep.mubr.f32.mxu0 0.0
          %581 = vmatmul.mubr.f32.gmra.mxu0 %v514
          %v582 = vpop.f32.mrf.mxu0
          %v583 = vadd.f32 %v497, %v582
          %v584 = vpop.f32.mrf.mxu0
          %585 = vdwg.mxu0
          %v586 = vmax.f32 %v583, 0.0
          %v587 = vmul.f32 %v586, 0.70710677
          %v590 = vunpack.c.l.s4 1966171168
          %v591 = vunpack.c.0.s8 %v590
          %v592 = vlaneseq
          %v593 = vshrl.u32 %v592, 7
          %v594 = vsub.s32 %v591, %v593
          %v595 = vrot.slane %v587, %v594
          %v596 = vcombine.high %v595, %v595
          %v598 = vunpack.c.l.s4 1966171168
          %v599 = vunpack.c.0.s8 %v598
          %v600 = vlaneseq
          %v601 = vshrl.u32 %v600, 7
          %v602 = vsub.s32 %v599, %v601
          %v603 = vrot.slane %v595, %v602
          %v605 = vunpack.c.l.s4 1966171168
          %v606 = vunpack.c.0.s8 %v605
          %v607 = vlaneseq
          %v608 = vshrl.u32 %v607, 7
          %v609 = vsub.s32 %v606, %v608
          %v610 = vrot.slane %v596, %v609
          %v611 = vlaneseq
          %v612 = vshrl.u32 %v611, 7
          %v613 = vsub.s32 0, %v612
          %v614 = vrot.slane %v603, %v613
          %v615 = vlaneseq
          %v616 = vshrl.u32 %v615, 7
          %v617 = vsub.s32 0, %v616
          %v618 = vrot.slane %v610, %v617
          %v621 = vmul.f32 %v463, %v614
          %v622 = vmul.f32 %v468, %v618
          %623 = vst.msk [vmem:[#allocation2] sm:$0xff] %vm471, %v621
          %624 = vst.msk [vmem:[#allocation2 + $0x8] sm:$0xff] %vm471, %v622
        $region48: #{tpu_custom_call.1} parent=43 // pred_fallthru
          _
        %v625 = vld [vmem:[#allocation2] sm:$0xff]
        %v626 = vld [vmem:[#allocation2 + $0x8] sm:$0xff]
        %vm627 = vcmask 261120
        %v629 = vsel %vm627, %v625, 0
        %631 = vmatprep.subr.mxu0 0.0
        %632 = vmatpush1.xpose.msra.mxu0 0.0
        %633 = vmatprep.subr.mxu0 0.0
        %634 = vmatpush1.xpose.msra.mxu0 0.0
        %635 = vmatprep.subr.mxu0 0.0
        %636 = vmatpush1.xpose.msra.mxu0 0.0
        %637 = vmatprep.subr.mxu0 0.0
        %638 = vmatpush1.xpose.msra.mxu0 0.0
        %639 = vmatprep.subr.mxu0 0.0
        %640 = vmatpush1.xpose.msra.mxu0 0.0
        %641 = vmatprep.subr.mxu0 0.0
        %642 = vmatpush1.xpose.msra.mxu0 0.0
        %643 = vmatprep.subr.mxu0 0.0
        %644 = vmatpush1.xpose.msra.mxu0 0.0
        %645 = vmatprep.subr.mxu0 0.0
        %646 = vmatpush1.xpose.msra.mxu0 0.0
        %647 = vmatprep.subr.mxu0 0.0
        %648 = vmatpush1.xpose.msra.mxu0 0.0
        %649 = vmatprep.subr.mxu0 0.0
        %650 = vmatpush1.xpose.msra.mxu0 0.0
        %651 = vmatprep.subr.mxu0 0.0
        %652 = vmatpush1.xpose.msra.mxu0 0.0
        %653 = vmatprep.subr.mxu0 0.0
        %654 = vmatpush1.xpose.msra.mxu0 0.0
        %655 = vmatprep.subr.mxu0 0.0
        %656 = vmatpush1.xpose.msra.mxu0 0.0
        %657 = vmatprep.subr.mxu0 0.0
        %658 = vmatpush1.xpose.msra.mxu0 0.0
        %659 = vmatprep.subr.mxu0 0.0
        %660 = vmatpush1.xpose.msra.mxu0 0.0
        %661 = vmatprep.subr.mxu0 0.0
        %662 = vmatpush1.xpose.msra.mxu0 %v629
        %663 = vmatprep.subr.mxu0 0.0
        %664 = vmatpush2.xpose.msra.mxu0 0.0
        %665 = vmatprep.subr.mxu0 0.0
        %666 = vmatpush2.xpose.msra.mxu0 0.0
        %667 = vmatprep.subr.mxu0 0.0
        %668 = vmatpush2.xpose.msra.mxu0 0.0
        %669 = vmatprep.subr.mxu0 0.0
        %670 = vmatpush2.xpose.msra.mxu0 0.0
        %671 = vmatprep.subr.mxu0 0.0
        %672 = vmatpush2.xpose.msra.mxu0 0.0
        %673 = vmatprep.subr.mxu0 0.0
        %674 = vmatpush2.xpose.msra.mxu0 0.0
        %675 = vmatprep.subr.mxu0 0.0
        %676 = vmatpush2.xpose.msra.mxu0 0.0
        %677 = vmatprep.subr.mxu0 0.0
        %678 = vmatpush2.xpose.msra.mxu0 0.0
        %679 = vmatprep.subr.mxu0 0.0
        %680 = vmatpush2.xpose.msra.mxu0 0.0
        %681 = vmatprep.subr.mxu0 0.0
        %682 = vmatpush2.xpose.msra.mxu0 0.0
        %683 = vmatprep.subr.mxu0 0.0
        %684 = vmatpush2.xpose.msra.mxu0 0.0
        %685 = vmatprep.subr.mxu0 0.0
        %686 = vmatpush2.xpose.msra.mxu0 0.0
        %687 = vmatprep.subr.mxu0 0.0
        %688 = vmatpush2.xpose.msra.mxu0 0.0
        %689 = vmatprep.subr.mxu0 0.0
        %690 = vmatpush2.xpose.msra.mxu0 0.0
        %691 = vmatprep.subr.mxu0 0.0
        %692 = vmatpush2.xpose.msra.mxu0 0.0
        %693 = vmatprep.subr.mxu0 0.0
        %694 = vmatpush2.xpose.msra.mxu0 0.0
        %695 = vmatprep.mubr.f32.mxu0 0.0
        %696 = vmatmul.mubr.f32.gmra.mxu0 %v629
        %v697 = vpop.f32.mrf.mxu0
        %v698 = vadd.f32 0.0, %v697
        %v699 = vpop.f32.mrf.mxu0
        %700 = vdwg.mxu0
        %v702 = vsel %vm627, %v626, 0
        %704 = vmatprep.subr.mxu0 0.0
        %705 = vmatpush1.xpose.msra.mxu0 0.0
        %706 = vmatprep.subr.mxu0 0.0
        %707 = vmatpush1.xpose.msra.mxu0 0.0
        %708 = vmatprep.subr.mxu0 0.0
        %709 = vmatpush1.xpose.msra.mxu0 0.0
        %710 = vmatprep.subr.mxu0 0.0
        %711 = vmatpush1.xpose.msra.mxu0 0.0
        %712 = vmatprep.subr.mxu0 0.0
        %713 = vmatpush1.xpose.msra.mxu0 0.0
        %714 = vmatprep.subr.mxu0 0.0
        %715 = vmatpush1.xpose.msra.mxu0 0.0
        %716 = vmatprep.subr.mxu0 0.0
        %717 = vmatpush1.xpose.msra.mxu0 0.0
        %718 = vmatprep.subr.mxu0 0.0
        %719 = vmatpush1.xpose.msra.mxu0 0.0
        %720 = vmatprep.subr.mxu0 0.0
        %721 = vmatpush1.xpose.msra.mxu0 0.0
        %722 = vmatprep.subr.mxu0 0.0
        %723 = vmatpush1.xpose.msra.mxu0 0.0
        %724 = vmatprep.subr.mxu0 0.0
        %725 = vmatpush1.xpose.msra.mxu0 0.0
        %726 = vmatprep.subr.mxu0 0.0
        %727 = vmatpush1.xpose.msra.mxu0 0.0
        %728 = vmatprep.subr.mxu0 0.0
        %729 = vmatpush1.xpose.msra.mxu0 0.0
        %730 = vmatprep.subr.mxu0 0.0
        %731 = vmatpush1.xpose.msra.mxu0 0.0
        %732 = vmatprep.subr.mxu0 0.0
        %733 = vmatpush1.xpose.msra.mxu0 0.0
        %734 = vmatprep.subr.mxu0 0.0
        %735 = vmatpush1.xpose.msra.mxu0 %v702
        %736 = vmatprep.subr.mxu0 0.0
        %737 = vmatpush2.xpose.msra.mxu0 0.0
        %738 = vmatprep.subr.mxu0 0.0
        %739 = vmatpush2.xpose.msra.mxu0 0.0
        %740 = vmatprep.subr.mxu0 0.0
        %741 = vmatpush2.xpose.msra.mxu0 0.0
        %742 = vmatprep.subr.mxu0 0.0
        %743 = vmatpush2.xpose.msra.mxu0 0.0
        %744 = vmatprep.subr.mxu0 0.0
        %745 = vmatpush2.xpose.msra.mxu0 0.0
        %746 = vmatprep.subr.mxu0 0.0
        %747 = vmatpush2.xpose.msra.mxu0 0.0
        %748 = vmatprep.subr.mxu0 0.0
        %749 = vmatpush2.xpose.msra.mxu0 0.0
        %750 = vmatprep.subr.mxu0 0.0
        %751 = vmatpush2.xpose.msra.mxu0 0.0
        %752 = vmatprep.subr.mxu0 0.0
        %753 = vmatpush2.xpose.msra.mxu0 0.0
        %754 = vmatprep.subr.mxu0 0.0
        %755 = vmatpush2.xpose.msra.mxu0 0.0
        %756 = vmatprep.subr.mxu0 0.0
        %757 = vmatpush2.xpose.msra.mxu0 0.0
        %758 = vmatprep.subr.mxu0 0.0
        %759 = vmatpush2.xpose.msra.mxu0 0.0
        %760 = vmatprep.subr.mxu0 0.0
        %761 = vmatpush2.xpose.msra.mxu0 0.0
        %762 = vmatprep.subr.mxu0 0.0
        %763 = vmatpush2.xpose.msra.mxu0 0.0
        %764 = vmatprep.subr.mxu0 0.0
        %765 = vmatpush2.xpose.msra.mxu0 0.0
        %766 = vmatprep.subr.mxu0 0.0
        %767 = vmatpush2.xpose.msra.mxu0 0.0
        %768 = vmatprep.mubr.f32.mxu0 0.0
        %769 = vmatmul.mubr.f32.gmra.mxu0 %v702
        %v770 = vpop.f32.mrf.mxu0
        %v771 = vadd.f32 0.0, %v770
        %v772 = vpop.f32.mrf.mxu0
        %773 = vdwg.mxu0
        %v774 = vtanh.pop %v698
        %v775 = vtanh.pop %v771
        %v776 = vmax.f32 %v774, 0.0
        %v777 = vmax.f32 %v775, 0.0
        %vm778 = vcmask 64512
        %v779 = vsel %vm778, %v776, 0.0
        %780 = vadd.xlane.f32.xlu0 %v779
        %v781 = vpop.xlane.xlu0 %780
        %v782 = vsel %vm778, %v777, 0.0
        %783 = vadd.xlane.f32.xlu0 %v782
        %v784 = vpop.xlane.xlu0 %783
        %v785 = vrcp.pop %v781
        %v786 = vrcp.pop %v784
        %787 = vst.msk [vmem:[%s351] sm:$0xff] %vm778, %v698
        %788 = vst.msk [vmem:[%s351 + $0x8] sm:$0xff] %vm778, %v771
        %789 = vst.msk [vmem:[%s344] sm:$0xff] %vm778, %v776
        %790 = vst.msk [vmem:[%s344 + $0x8] sm:$0xff] %vm778, %v777
        %v791 = vmul.f32 %v776, %v785
        %v792 = vmul.f32 %v777, %v786
        %793 = vst.msk [vmem:[%s337] sm:$0xff] %vm778, %v791
        %794 = vst.msk [vmem:[%s337 + $0x8] sm:$0xff] %vm778, %v792
        %s795 = sand.u32 %s184, 1
        %s796 = scalar_lea.sflag [#allocation4], %s795
        %s797 = sand.u32 %s184, 1
        %s798 = smul.addr %s797, 16
        %s799 = scalar_lea.vmem [#allocation3], %s798
        %s800 = sand.u32 %s26, 1
        %s801 = scalar_lea.sflag [#allocation6], %s800
        %s802 = sand.u32 %s212, 1
        %s803 = smul.addr %s802, 16
        %s804 = scalar_lea.vmem [#allocation5], %s803
        %s805 = sand.u32 %s26, 1
        %s806 = scalar_lea.sflag [#allocation6], %s805
        %s807 = sand.u32 %s240, 1
        %s808 = smul.addr %s807, 16
        %s809 = scalar_lea.vmem [#allocation7], %s808
        // Predicated region
        $region49: #{tpu_custom_call.1} parent=43 // pred_check
          %p810 = pneg %p194
        $region50: #{tpu_custom_call.1} parent=43 // pred_check_branch
          %812 = sbr.rel (%p810) target = $region52
        $region51: #{tpu_custom_call.1} parent=43 // pred_region
          %s813 = smul.u32 2, %s30
          %s815 = ssub.s32 256, 256
          %816 = vsyncadd %s796, %s815
          %s817 = sadd.s32 %s31, %s813
          %s818 = smul.addr %s817, 128
          %s819 = scalar_lea.hbm %s6, %s818
          %s820 = sshll.u32 %s799, 4
          %s821 = int_to_ptr.vmem [resolvable:$true] %s820
          %826 = dma.vmem_to_hbm [thread:$0]  %s821, 256, %s819, %s796, 128, 128, 8
        $region52: #{tpu_custom_call.1} parent=43 // pred_fallthru
          _
        // Predicated region
        $region53: #{tpu_custom_call.1} parent=43 // pred_check
          %p827 = pneg %p222
        $region54: #{tpu_custom_call.1} parent=43 // pred_check_branch
          %829 = sbr.rel (%p827) target = $region56
        $region55: #{tpu_custom_call.1} parent=43 // pred_region
          %s830 = smul.u32 2, %s30
          %s832 = ssub.s32 256, 256
          %833 = vsyncadd %s801, %s832
          %s834 = sadd.s32 %s31, %s830
          %s835 = smul.addr %s834, 128
          %s836 = scalar_lea.hbm %s7, %s835
          %s837 = sshll.u32 %s804, 4
          %s838 = int_to_ptr.vmem [resolvable:$true] %s837
          %843 = dma.vmem_to_hbm [thread:$0]  %s838, 256, %s836, %s801, 128, 128, 8
        $region56: #{tpu_custom_call.1} parent=43 // pred_fallthru
          _
        // Predicated region
        $region57: #{tpu_custom_call.1} parent=43 // pred_check
          %p844 = pneg %p250
        $region58: #{tpu_custom_call.1} parent=43 // pred_check_branch
          %846 = sbr.rel (%p844) target = $region60
        $region59: #{tpu_custom_call.1} parent=43 // pred_region
          %s847 = smul.u32 2, %s30
          %s849 = ssub.s32 256, 256
          %850 = vsyncadd %s806, %s849
          %s851 = sadd.s32 %s31, %s847
          %s852 = smul.addr %s851, 128
          %s853 = scalar_lea.hbm %s8, %s852
          %s854 = sshll.u32 %s809, 4
          %s855 = int_to_ptr.vmem [resolvable:$true] %s854
          %860 = dma.vmem_to_hbm [thread:$0]  %s855, 256, %s853, %s806, 128, 128, 8
        $region60: #{tpu_custom_call.1} parent=43 // pred_fallthru
          _
      $region44: #{tpu_custom_call.1} parent=5 // pred_fallthru
        _
      %p861 = scmp.le.s32.totalorder 2, %s21
      // Predicated region
      $region61: #{tpu_custom_call.1} parent=5 // pred_check
        %p862 = pneg %p861
      $region62: #{tpu_custom_call.1} parent=5 // pred_check_branch
        %864 = sbr.rel (%p862) target = $region64
      $region63: #{tpu_custom_call.1} parent=5 // pred_region
        %s865 = ssub.s32 %s21, 2
        // Predicated region
        $region65: #{tpu_custom_call.1} parent=63 // pred_check
          %p866 = pneg %p200
        $region66: #{tpu_custom_call.1} parent=63 // pred_check_branch
          %868 = sbr.rel (%p866) target = $region68
        $region67: #{tpu_custom_call.1} parent=63 // pred_region
          %s869 = sand.u32 %s185, 1
          %s870 = scalar_lea.sflag [#allocation4], %s869
          %s871 = sand.u32 %s185, 1
          %s872 = smul.addr %s871, 16
          %s873 = scalar_lea.vmem [#allocation3], %s872
          %874 = dma.done %s870, 256
        $region68: #{tpu_custom_call.1} parent=63 // pred_fallthru
          _
        // Predicated region
        $region69: #{tpu_custom_call.1} parent=63 // pred_check
          %p875 = pneg %p228
        $region70: #{tpu_custom_call.1} parent=63 // pred_check_branch
          %877 = sbr.rel (%p875) target = $region72
        $region71: #{tpu_custom_call.1} parent=63 // pred_region
          %s878 = sand.u32 %s27, 1
          %s879 = scalar_lea.sflag [#allocation6], %s878
          %s880 = sand.u32 %s213, 1
          %s881 = smul.addr %s880, 16
          %s882 = scalar_lea.vmem [#allocation5], %s881
          %883 = dma.done %s879, 256
        $region72: #{tpu_custom_call.1} parent=63 // pred_fallthru
          _
        // Predicated region
        $region73: #{tpu_custom_call.1} parent=63 // pred_check
          %p884 = pneg %p256
        $region74: #{tpu_custom_call.1} parent=63 // pred_check_branch
          %886 = sbr.rel (%p884) target = $region76
        $region75: #{tpu_custom_call.1} parent=63 // pred_region
          %s887 = sand.u32 %s27, 1
          %s888 = scalar_lea.sflag [#allocation6], %s887
          %s889 = sand.u32 %s241, 1
          %s890 = smul.addr %s889, 16
          %s891 = scalar_lea.vmem [#allocation7], %s890
          %892 = dma.done %s888, 256
        $region76: #{tpu_custom_call.1} parent=63 // pred_fallthru
          _
      $region64: #{tpu_custom_call.1} parent=5 // pred_fallthru
        _
    $region6: #{tpu_custom_call.1} parent=1 // loop_footer
      %s25 = sadd.s32 1, %s21
    $region7: #{tpu_custom_call.1} parent=1 // loop_footer_branch
      %20 = sbr.rel target = $region3
    $region8: #{tpu_custom_call.1} parent=1 // loop_exit
      _
    %893 = vsyncpa [#allocation4], 1
    %s894 = scalar_lea.sflag [#allocation4], 1
    %895 = vsyncpa %s894, 1
    %896 = vsyncpa [#allocation6], 1
    %s897 = scalar_lea.sflag [#allocation6], 1
    %898 = vsyncpa %s897, 1

</llo_original>
